<compile_context>
chip_gen: v5e
topology: v5e:2x2
jax: 0.10.0
libtpu: 0.0.40
codegen_flags: <defaults>
</compile_context>

<pallas_src>
import functools

import jax
import jax.numpy as jnp
from jax.experimental import pallas as pl
from jax.experimental.pallas import tpu as pltpu


# ----------------------------------------------------------------------------
# Kernels
# ----------------------------------------------------------------------------
def _conv1x1_kernel(x_ref, w_ref, b_ref, sc_ref, sh_ref, z_ref, *, activate_input):
    """Fused [prev-layer BN+ReLU] -> 1x1-conv (matmul) -> +bias.

    x_ref : (1, Cin, tn)   input tile (points on lanes)
    w_ref : (Cout, Cin)    conv/linear weight
    b_ref : (Cout, 1)      conv/linear bias
    sc_ref, sh_ref : (Cin, 1) folded BN scale/shift of the *previous* layer
                     (ignored for the first layer).
    z_ref : (1, Cout, tn)  pre-BN output tile
    """
    x = x_ref[0]  # (Cin, tn)
    if activate_input:
        # Previous layer's BatchNorm (folded to scale/shift) + ReLU, applied
        # as a prologue so the activated tensor never round-trips HBM.
        x = jnp.maximum(x * sc_ref[...] + sh_ref[...], 0.0)
    z = jnp.dot(w_ref[...], x, preferred_element_type=jnp.float32)  # (Cout, tn)
    z_ref[0] = (z + b_ref[...]).astype(z_ref.dtype)


def _bn_relu_kernel(z_ref, sc_ref, sh_ref, y_ref):
    """Final-layer fused BatchNorm (scale/shift form) + ReLU, lane-dense."""
    y_ref[0] = jnp.maximum(z_ref[0] * sc_ref[...] + sh_ref[...], 0.0).astype(y_ref.dtype)


# ----------------------------------------------------------------------------
# pallas_call wrappers
# ----------------------------------------------------------------------------
def _pick_tile_n(n, c_in, c_out, itemsize=4):
    """Lane-dense N-tile sized so the double-buffered in+out working set stays
    <= ~16 MiB (safe on v7x's 64 MiB VMEM; trivially fine on v5e/v6e)."""
    if n <= 512:
        return n
    budget = 16 * 1024 * 1024
    tn = 2048
    while tn > 512 and 2 * (c_in + c_out) * tn * itemsize > budget:
        tn //= 2
    return tn


def _conv1x1_fused(x, w, b, in_scale, in_shift, *, activate_input):
    bsz, c_in, n = x.shape
    c_out = w.shape[0]
    tn = _pick_tile_n(n, c_in, c_out)
    grid = (bsz, pl.cdiv(n, tn))
    kernel = functools.partial(_conv1x1_kernel, activate_input=activate_input)
    return pl.pallas_call(
        kernel,
        out_shape=jax.ShapeDtypeStruct((bsz, c_out, n), x.dtype),
        grid=grid,
        in_specs=[
            pl.BlockSpec((1, c_in, tn), lambda bi, ni: (bi, 0, ni)),
            pl.BlockSpec((c_out, c_in), lambda bi, ni: (0, 0)),
            pl.BlockSpec((c_out, 1), lambda bi, ni: (0, 0)),
            pl.BlockSpec((c_in, 1), lambda bi, ni: (0, 0)),
            pl.BlockSpec((c_in, 1), lambda bi, ni: (0, 0)),
        ],
        out_specs=pl.BlockSpec((1, c_out, tn), lambda bi, ni: (bi, 0, ni)),
        compiler_params=pltpu.CompilerParams(
            dimension_semantics=("parallel", "parallel")),
    )(x, w, b, in_scale, in_shift)


def _bn_relu(z, scale, shift):
    bsz, c, n = z.shape
    tn = _pick_tile_n(n, c, c)
    grid = (bsz, pl.cdiv(n, tn))
    return pl.pallas_call(
        _bn_relu_kernel,
        out_shape=jax.ShapeDtypeStruct(z.shape, z.dtype),
        grid=grid,
        in_specs=[
            pl.BlockSpec((1, c, tn), lambda bi, ni: (bi, 0, ni)),
            pl.BlockSpec((c, 1), lambda bi, ni: (0, 0)),
            pl.BlockSpec((c, 1), lambda bi, ni: (0, 0)),
        ],
        out_specs=pl.BlockSpec((1, c, tn), lambda bi, ni: (bi, 0, ni)),
        compiler_params=pltpu.CompilerParams(
            dimension_semantics=("parallel", "parallel")),
    )(z, scale, shift)


# ----------------------------------------------------------------------------
# MLPNet forward
# ----------------------------------------------------------------------------
def mlpnet_forward(x, params, *, b_shared=True, eps=1e-5):
    """Pallas forward of MLPNet (training-mode BatchNorm statistics)."""
    if b_shared:
        h = x  # (B, Cin, N)
    else:
        # Linear path: (B, Cin) -> view batch as the point axis of one pseudo
        # sample, so BatchNorm1d's per-feature reduction over the batch matches
        # the shared path's reduction over (batch, points).  Cheap XLA transpose.
        h = jnp.transpose(x, (1, 0))[None]  # (1, Cin, B)

    in_scale = None
    in_shift = None
    for i, p in enumerate(params):
        c_in = h.shape[1]
        if i == 0:
            # unused (activate_input=False); tiny placeholder inputs
            in_scale = jnp.ones((c_in, 1), h.dtype)
            in_shift = jnp.zeros((c_in, 1), h.dtype)
        z = _conv1x1_fused(
            h, p["w"], p["b"].reshape(-1, 1), in_scale, in_shift,
            activate_input=(i > 0))
        # Training-mode batch statistics per output channel over (batch, points).
        mean = jnp.mean(z, axis=(0, 2))
        var = jnp.var(z, axis=(0, 2))
        scale = p["gamma"] * jax.lax.rsqrt(var + eps)
        shift = p["beta"] - mean * scale
        in_scale = scale.reshape(-1, 1).astype(z.dtype)
        in_shift = shift.reshape(-1, 1).astype(z.dtype)
        h = z

    y = _bn_relu(h, in_scale, in_shift)  # last layer's BN + ReLU
    if not b_shared:
        y = jnp.transpose(y[0], (1, 0))  # back to (B, Cout)
    return y


# ----------------------------------------------------------------------------
# Pure-JAX reference (mirrors torch semantics, training-mode BN)
# ----------------------------------------------------------------------------
def mlpnet_ref(x, params, *, b_shared=True, eps=1e-5):
    h = x
    for p in params:
        if b_shared:
            z = jnp.einsum("oc,bcn->bon", p["w"], h) + p["b"][None, :, None]
            mean = jnp.mean(z, axis=(0, 2), keepdims=True)
            var = jnp.var(z, axis=(0, 2), keepdims=True)
            zn = (z - mean) * jax.lax.rsqrt(var + eps)
            h = jax.nn.relu(zn * p["gamma"][None, :, None] + p["beta"][None, :, None])
        else:
            z = h @ p["w"].T + p["b"]
            mean = jnp.mean(z, axis=0, keepdims=True)
            var = jnp.var(z, axis=0, keepdims=True)
            zn = (z - mean) * jax.lax.rsqrt(var + eps)
            h = jax.nn.relu(zn * p["gamma"] + p["beta"])
    return h


def init_params(key, nch_input, nch_layers, dtype=jnp.float32):
    params = []
    last = nch_input
    for outp in nch_layers:
        key, kw, kb = jax.random.split(key, 3)
        bound = 1.0 / (last ** 0.5)
        params.append({
            "w": jax.random.uniform(kw, (outp, last), dtype, -bound, bound),
            "b": jax.random.uniform(kb, (outp,), dtype, -bound, bound),
            "gamma": jnp.ones((outp,), dtype),
            "beta": jnp.zeros((outp,), dtype),
        })
        last = outp
    return params


if __name__ == "__main__":
    key = jax.random.PRNGKey(0)
    kx, kp, kx2, kp2 = jax.random.split(key, 4)

    # --- shared-weight (Conv1d k=1) mode: point features [B, Cin, N] ---
    B, Cin, N = 2, 3, 64
    layers = (32, 64)
    x = jax.random.normal(kx, (B, Cin, N), dtype=jnp.float32)
    params = init_params(kp, Cin, layers)

    y = mlpnet_forward(x, params, b_shared=True)
    jax.block_until_ready(y)
    y_ref = mlpnet_ref(x, params, b_shared=True)
    assert y.shape == (B, layers[-1], N), y.shape
    assert jnp.allclose(y, y_ref, rtol=1e-2, atol=1e-2), float(
        jnp.max(jnp.abs(y - y_ref)))

    # --- non-shared (Linear) mode: flat features [B, Cin] ---
    B2, Cin2 = 8, 32
    layers2 = (16, 8)
    x2 = jax.random.normal(kx2, (B2, Cin2), dtype=jnp.float32)
    params2 = init_params(kp2, Cin2, layers2)

    y2 = mlpnet_forward(x2, params2, b_shared=False)
    jax.block_until_ready(y2)
    y2_ref = mlpnet_ref(x2, params2, b_shared=False)
    assert y2.shape == (B2, layers2[-1]), y2.shape
    assert jnp.allclose(y2, y2_ref, rtol=1e-2, atol=1e-2), float(
        jnp.max(jnp.abs(y2 - y2_ref)))

    print("KERNEL_OK")
</pallas_src>

<mosaic_0001>
module attributes {stable_mosaic.version = 11 : i64} {
  func.func @_conv1x1_kernel(%arg0: i32, %arg1: i32, %arg2: memref<1x3x64xf32, #tpu.memory_space<vmem>>, %arg3: memref<32x3xf32, #tpu.memory_space<vmem>>, %arg4: memref<32x1xf32, #tpu.memory_space<vmem>>, %arg5: memref<3x1xf32, #tpu.memory_space<vmem>>, %arg6: memref<3x1xf32, #tpu.memory_space<vmem>>, %arg7: memref<1x32x64xf32, #tpu.memory_space<vmem>>) attributes {dimension_semantics = [#tpu.dimension_semantics<parallel>, #tpu.dimension_semantics<parallel>], iteration_bounds = array<i64: 2, 1>, scalar_prefetch = 0 : i64, scratch_operands = 0 : i64, tpu.core_type = #tpu.core_type<tc>, window_params = [{transform_indices = @transform_0, window_bounds = array<i64: 1, 3, 64>}, {pipeline_mode = #tpu.pipeline_mode<synchronous>, transform_indices = @transform_1, window_bounds = array<i64: 32, 3>}, {pipeline_mode = #tpu.pipeline_mode<synchronous>, transform_indices = @transform_2, window_bounds = array<i64: 32, 1>}, {pipeline_mode = #tpu.pipeline_mode<synchronous>, transform_indices = @transform_3, window_bounds = array<i64: 3, 1>}, {pipeline_mode = #tpu.pipeline_mode<synchronous>, transform_indices = @transform_4, window_bounds = array<i64: 3, 1>}, {transform_indices = @transform_5, window_bounds = array<i64: 1, 32, 64>}]} {
    %c0 = arith.constant 0 : index
    %c0_0 = arith.constant 0 : index
    %c0_1 = arith.constant 0 : index
    %0 = vector.load %arg2[%c0, %c0_0, %c0_1] : memref<1x3x64xf32, #tpu.memory_space<vmem>>, vector<1x3x64xf32>
    %1 = vector.shape_cast %0 : vector<1x3x64xf32> to vector<3x64xf32>
    %c0_2 = arith.constant 0 : index
    %c0_3 = arith.constant 0 : index
    %2 = vector.load %arg3[%c0_2, %c0_3] : memref<32x3xf32, #tpu.memory_space<vmem>>, vector<32x3xf32>
    %cst = arith.constant dense<0.000000e+00> : vector<32x64xf32>
    %3 = tpu.matmul %2, %1, %cst {dimension_numbers = #tpu.dot_dimension_numbers<[1], [0], [0], [1], [0, 0, 1, 1], [], []>} : vector<32x3xf32>, vector<3x64xf32>, vector<32x64xf32> -> vector<32x64xf32>
    %c0_4 = arith.constant 0 : index
    %c0_5 = arith.constant 0 : index
    %4 = vector.load %arg4[%c0_4, %c0_5] : memref<32x1xf32, #tpu.memory_space<vmem>>, vector<32x1xf32>
    %5 = vector.broadcast %4 : vector<32x1xf32> to vector<32x64xf32>
    %6 = arith.addf %3, %5 : vector<32x64xf32>
    %c0_6 = arith.constant 0 : index
    %c0_7 = arith.constant 0 : index
    %c0_8 = arith.constant 0 : index
    %7 = vector.load %arg7[%c0_6, %c0_7, %c0_8] : memref<1x32x64xf32, #tpu.memory_space<vmem>>, vector<1x32x64xf32>
    %8 = vector.shape_cast %7 : vector<1x32x64xf32> to vector<32x64xf32>
    %9 = vector.shape_cast %6 : vector<32x64xf32> to vector<1x32x64xf32>
    tpu.vector_store %arg7[%c0_6, %c0_7, %c0_8], %9 {strides = array<i32>} : memref<1x32x64xf32, #tpu.memory_space<vmem>>, vector<1x32x64xf32>,
    return
  }
  func.func @transform_0(%arg0: i32, %arg1: i32) -> (i32, i32, i32) {
    %c0_i32 = arith.constant 0 : i32
    %c0_i32_0 = arith.constant 0 : i32
    return %arg0, %c0_i32, %arg1 : i32, i32, i32
  }
  func.func @transform_1(%arg0: i32, %arg1: i32) -> (i32, i32) {
    %c0_i32 = arith.constant 0 : i32
    %c0_i32_0 = arith.constant 0 : i32
    %c0_i32_1 = arith.constant 0 : i32
    return %c0_i32, %c0_i32_0 : i32, i32
  }
  func.func @transform_2(%arg0: i32, %arg1: i32) -> (i32, i32) {
    %c0_i32 = arith.constant 0 : i32
    %c0_i32_0 = arith.constant 0 : i32
    %c0_i32_1 = arith.constant 0 : i32
    return %c0_i32, %c0_i32_0 : i32, i32
  }
  func.func @transform_3(%arg0: i32, %arg1: i32) -> (i32, i32) {
    %c0_i32 = arith.constant 0 : i32
    %c0_i32_0 = arith.constant 0 : i32
    %c0_i32_1 = arith.constant 0 : i32
    return %c0_i32, %c0_i32_0 : i32, i32
  }
  func.func @transform_4(%arg0: i32, %arg1: i32) -> (i32, i32) {
    %c0_i32 = arith.constant 0 : i32
    %c0_i32_0 = arith.constant 0 : i32
    %c0_i32_1 = arith.constant 0 : i32
    return %c0_i32, %c0_i32_0 : i32, i32
  }
  func.func @transform_5(%arg0: i32, %arg1: i32) -> (i32, i32, i32) {
    %c0_i32 = arith.constant 0 : i32
    %c0_i32_0 = arith.constant 0 : i32
    return %arg0, %c0_i32, %arg1 : i32, i32, i32
  }
}

</mosaic_0001>

<llo_original>
// kernel: tpu_custom_call.1
$region0: #{tpu_custom_call.1}
  #allocation0 [shape = 'u32[]', space=smem, size = 0x4, offset = 0x4, fixed_abs, tag = 'smem constant byte address 0x4 - core index']
  #allocation1 [shape = 'u32[72,128]{1,0:T(1,128)}', space=vmem, size = 0x9000, scoped, tag = 'internal scratch']
  %s0 = inlined_call_operand.vmem [shape: f32[2,3,64], index: 0, kind: input, shape index: {}]
  %s1 = inlined_call_operand.vmem [shape: f32[32,3], index: 1, kind: input, shape index: {}]
  %s2 = inlined_call_operand.vmem [shape: f32[32,1], index: 2, kind: input, shape index: {}]
  %s3 = inlined_call_operand.vmem [shape: f32[3,1], index: 3, kind: input, shape index: {}]
  %s4 = inlined_call_operand.vmem [shape: f32[3,1], index: 4, kind: input, shape index: {}]
  %s5 = inlined_call_operand.hbm [shape: f32[2,32,64], index: 5, kind: output, shape index: {}]
  %s6 = sld [smem:[#allocation0]]
  $region53: #{tpu_custom_call.1} parent=0
    _
  %s8 = ssub.s32 1, %s6
  %s9 = scalar_select 0, %s8, %s6
  $region1: #{tpu_custom_call.1} parent=0
    #allocation2 [shape = 'u8[32768]{0}', space=vmem, size = 0x8000, scoped, tag = 'output window, operand 0']
    #allocation3 [shape = 's32[2]{0}', space=sflag, size = 0x8, scoped, tag = 'scoped memory for tpu_custom_call.1']
    %10 = vsyncpa [#allocation3], 0
    %s11 = scalar_lea.sflag [#allocation3], 1
    %12 = vsyncpa %s11, 0
    loop: start=0, step=1, limit=4
    $region2: #{tpu_custom_call.1} parent=1 // loop_pre_header
      _
    $region3: #{tpu_custom_call.1} parent=1 // loop_header
      %s14 = sphi 0, %s18
      %p15 = scmp.ge.s32.totalorder %s14, 4
      %s21 = sphi 0, %s33
      %s22 = sphi 0, %s29
      %s23 = sphi 0, %s21
      %s24 = sphi 0, %s22
      %s25 = sphi 0, %s23
      %s26 = sphi 0, %s24
      %s38 = sphi 0, %s40
      %s41 = sphi 0, %s38
      %s42 = sphi 0, %s41
      %s58 = sphi 0, %s42
      %s62 = sphi 0, %s62
      %s64 = sphi 0, %s62
      %s65 = sphi 0, %s64
      %s79 = sphi 0, %s65
      %s83 = sphi 0, %s83
      %s85 = sphi 0, %s83
      %s86 = sphi 0, %s85
      %s100 = sphi 0, %s86
      %s104 = sphi 0, %s104
      %s106 = sphi 0, %s104
      %s107 = sphi 0, %s106
      %s121 = sphi 0, %s107
      %s125 = sphi 0, %s125
      %s127 = sphi 0, %s125
      %s128 = sphi 0, %s127
      %s142 = sphi 0, %s128
      %s150 = sphi 0, %s152
      %s153 = sphi 0, %s150
      %s154 = sphi 0, %s153
      %s170 = sphi 0, %s154
    $region4: #{tpu_custom_call.1} parent=1 // loop_header_branch
      %17 = sbr.rel (%p15) target = $region8
    $region5: #{tpu_custom_call.1} parent=1 // loop_body
      %s19 = ssub.s32 %s14, 1
      %s20 = ssub.s32 %s14, 2
      %s27 = sadd.s32 1, %s22
      %p28 = scmp.ge.s32.totalorder %s27, 1
      %s29 = scalar_select %p28, 0, %s27
      %s30 = sadd.s32 1, %s21
      %s31 = scalar_select %p28, %s30, %s21
      %p32 = scmp.ge.s32.totalorder %s31, 2
      %s33 = scalar_select %p32, 0, %s31
      %s34 = ssub.s32 %s21, %s33
      %s35 = ssub.s32 %s22, %s29
      %s36 = sor.u32 %s34, %s35
      %p37 = scmp.eq.s32.totalorder %s36, 0
      %s39 = sadd.s32 %s38, 1
      %s40 = scalar_select %p37, %s38, %s39
      %p43 = pneg %p37
      %p44 = scmp.eq.s32.totalorder %s14, 1
      %p45 = por %p43, %p44
      %p46 = scmp.ne.s32.totalorder %s38, %s41
      %p47 = scmp.eq.s32.totalorder %s14, 0
      %p48 = por %p46, %p47
      %p49 = scmp.ne.s32.totalorder %s38, %s41
      %p50 = scmp.eq.s32.totalorder %s19, 1
      %p51 = por %p49, %p50
      %p52 = scmp.ne.s32.totalorder %s41, %s42
      %p53 = scmp.eq.s32.totalorder %s19, 0
      %p54 = por %p52, %p53
      %p55 = scmp.ne.s32.totalorder %s41, %s42
      %p56 = scmp.eq.s32.totalorder %s20, 1
      %p57 = por %p55, %p56
      %p59 = scmp.ne.s32.totalorder %s42, %s58
      %p60 = scmp.eq.s32.totalorder %s20, 0
      %p61 = por %p59, %p60
      %s63 = sadd.s32 %s62, 1
      %p66 = scmp.eq.s32.totalorder %s14, 1
      %p67 = scmp.ne.s32.totalorder %s62, %s64
      %p68 = scmp.eq.s32.totalorder %s14, 0
      %p69 = por %p67, %p68
      %p70 = scmp.ne.s32.totalorder %s62, %s64
      %p71 = scmp.eq.s32.totalorder %s19, 1
      %p72 = por %p70, %p71
      %p73 = scmp.ne.s32.totalorder %s64, %s65
      %p74 = scmp.eq.s32.totalorder %s19, 0
      %p75 = por %p73, %p74
      %p76 = scmp.ne.s32.totalorder %s64, %s65
      %p77 = scmp.eq.s32.totalorder %s20, 1
      %p78 = por %p76, %p77
      %p80 = scmp.ne.s32.totalorder %s65, %s79
      %p81 = scmp.eq.s32.totalorder %s20, 0
      %p82 = por %p80, %p81
      %s84 = sadd.s32 %s83, 1
      %p87 = scmp.eq.s32.totalorder %s14, 1
      %p88 = scmp.ne.s32.totalorder %s83, %s85
      %p89 = scmp.eq.s32.totalorder %s14, 0
      %p90 = por %p88, %p89
      %p91 = scmp.ne.s32.totalorder %s83, %s85
      %p92 = scmp.eq.s32.totalorder %s19, 1
      %p93 = por %p91, %p92
      %p94 = scmp.ne.s32.totalorder %s85, %s86
      %p95 = scmp.eq.s32.totalorder %s19, 0
      %p96 = por %p94, %p95
      %p97 = scmp.ne.s32.totalorder %s85, %s86
      %p98 = scmp.eq.s32.totalorder %s20, 1
      %p99 = por %p97, %p98
      %p101 = scmp.ne.s32.totalorder %s86, %s100
      %p102 = scmp.eq.s32.totalorder %s20, 0
      %p103 = por %p101, %p102
      %s105 = sadd.s32 %s104, 1
      %p108 = scmp.eq.s32.totalorder %s14, 1
      %p109 = scmp.ne.s32.totalorder %s104, %s106
      %p110 = scmp.eq.s32.totalorder %s14, 0
      %p111 = por %p109, %p110
      %p112 = scmp.ne.s32.totalorder %s104, %s106
      %p113 = scmp.eq.s32.totalorder %s19, 1
      %p114 = por %p112, %p113
      %p115 = scmp.ne.s32.totalorder %s106, %s107
      %p116 = scmp.eq.s32.totalorder %s19, 0
      %p117 = por %p115, %p116
      %p118 = scmp.ne.s32.totalorder %s106, %s107
      %p119 = scmp.eq.s32.totalorder %s20, 1
      %p120 = por %p118, %p119
      %p122 = scmp.ne.s32.totalorder %s107, %s121
      %p123 = scmp.eq.s32.totalorder %s20, 0
      %p124 = por %p122, %p123
      %s126 = sadd.s32 %s125, 1
      %p129 = scmp.eq.s32.totalorder %s14, 1
      %p130 = scmp.ne.s32.totalorder %s125, %s127
      %p131 = scmp.eq.s32.totalorder %s14, 0
      %p132 = por %p130, %p131
      %p133 = scmp.ne.s32.totalorder %s125, %s127
      %p134 = scmp.eq.s32.totalorder %s19, 1
      %p135 = por %p133, %p134
      %p136 = scmp.ne.s32.totalorder %s127, %s128
      %p137 = scmp.eq.s32.totalorder %s19, 0
      %p138 = por %p136, %p137
      %p139 = scmp.ne.s32.totalorder %s127, %s128
      %p140 = scmp.eq.s32.totalorder %s20, 1
      %p141 = por %p139, %p140
      %p143 = scmp.ne.s32.totalorder %s128, %s142
      %p144 = scmp.eq.s32.totalorder %s20, 0
      %p145 = por %p143, %p144
      %s146 = ssub.s32 %s21, %s33
      %s147 = ssub.s32 %s22, %s29
      %s148 = sor.u32 %s146, %s147
      %p149 = scmp.eq.s32.totalorder %s148, 0
      %s151 = sadd.s32 %s150, 1
      %s152 = scalar_select %p149, %s150, %s151
      %p155 = pneg %p149
      %p156 = scmp.eq.s32.totalorder %s14, 1
      %p157 = por %p155, %p156
      %p158 = scmp.ne.s32.totalorder %s150, %s153
      %p159 = scmp.eq.s32.totalorder %s14, 0
      %p160 = por %p158, %p159
      %p161 = scmp.ne.s32.totalorder %s150, %s153
      %p162 = scmp.eq.s32.totalorder %s19, 1
      %p163 = por %p161, %p162
      %p164 = scmp.ne.s32.totalorder %s153, %s154
      %p165 = scmp.eq.s32.totalorder %s19, 0
      %p166 = por %p164, %p165
      %p167 = scmp.ne.s32.totalorder %s153, %s154
      %p168 = scmp.eq.s32.totalorder %s20, 1
      %p169 = por %p167, %p168
      %p171 = scmp.ne.s32.totalorder %s154, %s170
      %p172 = scmp.eq.s32.totalorder %s20, 0
      %p173 = por %p171, %p172
      %p174 = scmp.le.s32.totalorder 1, %s14
      %p175 = scmp.lt.s32.totalorder %s14, 3
      %p176 = pnand %p174, %p175
      %p177 = pneg %p176
      // Predicated region
      $region9: #{tpu_custom_call.1} parent=5 // pred_check
        _
      $region10: #{tpu_custom_call.1} parent=5 // pred_check_branch
        %179 = sbr.rel (%p176) target = $region12
      $region11: #{tpu_custom_call.1} parent=5 // pred_region
        %s180 = ssub.s32 %s14, 1
        // Predicated region
        $region13: #{tpu_custom_call.1} parent=11 // pred_check
          %p181 = pneg %p75
        $region14: #{tpu_custom_call.1} parent=11 // pred_check_branch
          %183 = sbr.rel (%p181) target = $region16
        $region15: #{tpu_custom_call.1} parent=11 // pred_region
          _
        $region16: #{tpu_custom_call.1} parent=11 // pred_fallthru
          _
        // Predicated region
        $region17: #{tpu_custom_call.1} parent=11 // pred_check
          %p184 = pneg %p96
        $region18: #{tpu_custom_call.1} parent=11 // pred_check_branch
          %186 = sbr.rel (%p184) target = $region20
        $region19: #{tpu_custom_call.1} parent=11 // pred_region
          _
        $region20: #{tpu_custom_call.1} parent=11 // pred_fallthru
          _
        // Predicated region
        $region21: #{tpu_custom_call.1} parent=11 // pred_check
          %p187 = pneg %p117
        $region22: #{tpu_custom_call.1} parent=11 // pred_check_branch
          %189 = sbr.rel (%p187) target = $region24
        $region23: #{tpu_custom_call.1} parent=11 // pred_region
          _
        $region24: #{tpu_custom_call.1} parent=11 // pred_fallthru
          _
        // Predicated region
        $region25: #{tpu_custom_call.1} parent=11 // pred_check
          %p190 = pneg %p138
        $region26: #{tpu_custom_call.1} parent=11 // pred_check_branch
          %192 = sbr.rel (%p190) target = $region28
        $region27: #{tpu_custom_call.1} parent=11 // pred_region
          _
        $region28: #{tpu_custom_call.1} parent=11 // pred_fallthru
          _
      $region12: #{tpu_custom_call.1} parent=5 // pred_fallthru
        _
      %p193 = scmp.lt.s32.totalorder %s14, 2
      // Predicated region
      $region29: #{tpu_custom_call.1} parent=5 // pred_check
        %p194 = pneg %p193
      $region30: #{tpu_custom_call.1} parent=5 // pred_check_branch
        %196 = sbr.rel (%p194) target = $region32
      $region31: #{tpu_custom_call.1} parent=5 // pred_region
        // Predicated region
        $region33: #{tpu_custom_call.1} parent=31 // pred_check
          %p197 = pneg %p48
        $region34: #{tpu_custom_call.1} parent=31 // pred_check_branch
          %199 = sbr.rel (%p197) target = $region36
        $region35: #{tpu_custom_call.1} parent=31 // pred_region
          %p200 = scmp.lt.s32.totalorder %s21, 1
          %s201 = scalar_select %p200, %s21, 1
          %p202 = scmp.lt.s32.totalorder %s22, 0
          %s203 = scalar_select %p202, %s22, 0
          %s204 = sadd.s32 %s203, %s201
          %s205 = smul.addr %s204, 4
          %s206 = scalar_lea.vmem %s0, %s205
        $region36: #{tpu_custom_call.1} parent=31 // pred_fallthru
          _
      $region32: #{tpu_custom_call.1} parent=5 // pred_fallthru
        _
      %p207 = scmp.le.s32.totalorder 1, %s14
      %p208 = scmp.lt.s32.totalorder %s14, 3
      %p209 = pnand %p207, %p208
      %p210 = pneg %p209
      // Predicated region
      $region37: #{tpu_custom_call.1} parent=5 // pred_check
        _
      $region38: #{tpu_custom_call.1} parent=5 // pred_check_branch
        %212 = sbr.rel (%p209) target = $region40
      $region39: #{tpu_custom_call.1} parent=5 // pred_region
        %s213 = ssub.s32 %s14, 1
        %p214 = scmp.lt.s32.totalorder %s23, 1
        %s215 = scalar_select %p214, %s23, 1
        %p216 = scmp.lt.s32.totalorder %s24, 0
        %s217 = scalar_select %p216, %s24, 0
        %s218 = sadd.s32 %s217, %s215
        %s219 = smul.addr %s218, 4
        %s220 = scalar_lea.vmem %s0, %s219
        %p221 = pneg %p54
        %p222 = pneg %p51
        %p223 = pneg %p75
        %p224 = pneg %p72
        %p225 = pneg %p96
        %p226 = pneg %p93
        %p227 = pneg %p117
        %p228 = pneg %p114
        %p229 = pneg %p138
        %p230 = pneg %p135
        %p231 = pneg %p166
        %p232 = pneg %p163
        %s233 = sand.u32 %s153, 1
        %s234 = scalar_lea.sflag [#allocation3], %s233
        %s235 = sand.u32 %s153, 1
        %s236 = smul.addr %s235, 32
        %s237 = scalar_lea.vmem [#allocation2], %s236
        %p238 = scmp.lt.s32.totalorder %s23, 1
        %s239 = scalar_select %p238, %s23, 1
        %p240 = scmp.lt.s32.totalorder %s24, 0
        %s241 = scalar_select %p240, %s24, 0
        %s242 = sadd.s32 %s241, %s239
        %s243 = smul.addr %s242, 4
        %s244 = scalar_lea.vmem %s0, %s243
        %v245 = vld [vmem:[%s244] sm:$0x7]
        %v246 = vld [vmem:[%s1] sm:$0xff]
        %v247 = vld [vmem:[%s1 + $0x8] sm:$0xff]
        %v248 = vld [vmem:[%s1 + $0x10] sm:$0xff]
        %v249 = vld [vmem:[%s1 + $0x18] sm:$0xff]
        %v250 = vld [vmem:[%s2] sm:$0xff]
        %v251 = vld [vmem:[%s2 + $0x8] sm:$0xff]
        %v252 = vld [vmem:[%s2 + $0x10] sm:$0xff]
        %v253 = vld [vmem:[%s2 + $0x18] sm:$0xff]
        %255 = vset.pattern.permute.xlu0 0
        %256 = vperm.xlu0 %255, %v250
        %v257 = vpop.permute.xlu0 %256
        %260 = vset.pattern.permute.xlu0 0
        %261 = vperm.xlu0 %260, %v251
        %v262 = vpop.permute.xlu0 %261
        %265 = vset.pattern.permute.xlu0 0
        %266 = vperm.xlu0 %265, %v252
        %v267 = vpop.permute.xlu0 %266
        %270 = vset.pattern.permute.xlu0 0
        %271 = vperm.xlu0 %270, %v253
        %v272 = vpop.permute.xlu0 %271
        %vm274 = vcmask 23552
        %v276 = vsel %vm274, %v246, 0
        %v279 = vsel %vm274, %v247, 0
        %v282 = vsel %vm274, %v248, 0
        %v285 = vsel %vm274, %v249, 0
        %vm287 = vcmask 1042432
        %v289 = vsel %vm287, %v245, 0
        %291 = vmatpush.msra.mxu0 0.0
        %292 = vmatpush.msra.mxu0 0.0
        %293 = vmatpush.msra.mxu0 0.0
        %294 = vmatpush.msra.mxu0 0.0
        %295 = vmatpush.msra.mxu0 0.0
        %296 = vmatpush.msra.mxu0 0.0
        %297 = vmatpush.msra.mxu0 0.0
        %298 = vmatpush.msra.mxu0 0.0
        %299 = vmatpush.msra.mxu0 0.0
        %300 = vmatpush.msra.mxu0 0.0
        %301 = vmatpush.msra.mxu0 0.0
        %302 = vmatpush.msra.mxu0 0.0
        %303 = vmatpush.msra.mxu0 0.0
        %304 = vmatpush.msra.mxu0 0.0
        %305 = vmatpush.msra.mxu0 0.0
        %306 = vmatpush.msra.mxu0 %v289
        %307 = vmatmul.f32.gmra.mxu0 %v276
        %v308 = vpop.f32.mrf.mxu0
        %v309 = vadd.f32 %v257, %v308
        %310 = vmatmul.f32.gmra.mxu0 %v279
        %v311 = vpop.f32.mrf.mxu0
        %v312 = vadd.f32 %v262, %v311
        %313 = vmatmul.f32.gmra.mxu0 %v282
        %v314 = vpop.f32.mrf.mxu0
        %v315 = vadd.f32 %v267, %v314
        %316 = vmatmul.f32.gmra.mxu0 %v285
        %v317 = vpop.f32.mrf.mxu0
        %v318 = vadd.f32 %v272, %v317
        %319 = vdwg.mxu0
        %vm320 = vcmask 523264
        %321 = vst.msk [vmem:[%s237] sm:$0xff] %vm320, %v309
        %322 = vst.msk [vmem:[%s237 + $0x8] sm:$0xff] %vm320, %v312
        %323 = vst.msk [vmem:[%s237 + $0x10] sm:$0xff] %vm320, %v315
        %324 = vst.msk [vmem:[%s237 + $0x18] sm:$0xff] %vm320, %v318
        %s325 = sand.u32 %s153, 1
        %s326 = scalar_lea.sflag [#allocation3], %s325
        %s327 = sand.u32 %s153, 1
        %s328 = smul.addr %s327, 32
        %s329 = scalar_lea.vmem [#allocation2], %s328
        // Predicated region
        $region41: #{tpu_custom_call.1} parent=39 // pred_check
          %p330 = pneg %p163
        $region42: #{tpu_custom_call.1} parent=39 // pred_check_branch
          %332 = sbr.rel (%p330) target = $region44
        $region43: #{tpu_custom_call.1} parent=39 // pred_region
          %334 = vsyncadd %s326, 0
          %s335 = smul.addr %s23, 4
          %s336 = sadd.s32 %s24, %s335
          %s337 = smul.addr %s336, 8
          %s338 = scalar_lea.hbm %s5, %s337
          %s339 = sshll.u32 %s329, 4
          %s340 = int_to_ptr.vmem [resolvable:$true] %s339
          %s341 = sshll.u32 %s338, 4
          %s342 = int_to_ptr.hbm [resolvable:$true] %s341
          %347 = dma.vmem_to_hbm [thread:$0]  %s340, 512, %s342, %s326, 128, 128, 8
        $region44: #{tpu_custom_call.1} parent=39 // pred_fallthru
          _
      $region40: #{tpu_custom_call.1} parent=5 // pred_fallthru
        _
      %p348 = scmp.le.s32.totalorder 2, %s14
      // Predicated region
      $region45: #{tpu_custom_call.1} parent=5 // pred_check
        %p349 = pneg %p348
      $region46: #{tpu_custom_call.1} parent=5 // pred_check_branch
        %351 = sbr.rel (%p349) target = $region48
      $region47: #{tpu_custom_call.1} parent=5 // pred_region
        %s352 = ssub.s32 %s14, 2
        // Predicated region
        $region49: #{tpu_custom_call.1} parent=47 // pred_check
          %p353 = pneg %p169
        $region50: #{tpu_custom_call.1} parent=47 // pred_check_branch
          %355 = sbr.rel (%p353) target = $region52
        $region51: #{tpu_custom_call.1} parent=47 // pred_region
          %s356 = sand.u32 %s154, 1
          %s357 = scalar_lea.sflag [#allocation3], %s356
          %s358 = sand.u32 %s154, 1
          %s359 = smul.addr %s358, 32
          %s360 = scalar_lea.vmem [#allocation2], %s359
          %362 = dma.done %s357, 512
        $region52: #{tpu_custom_call.1} parent=47 // pred_fallthru
          _
      $region48: #{tpu_custom_call.1} parent=5 // pred_fallthru
        _
    $region6: #{tpu_custom_call.1} parent=1 // loop_footer
      %s18 = sadd.s32 1, %s14
    $region7: #{tpu_custom_call.1} parent=1 // loop_footer_branch
      %13 = sbr.rel target = $region3
    $region8: #{tpu_custom_call.1} parent=1 // loop_exit
      _
    %363 = vsyncpa [#allocation3], 1
    %s364 = scalar_lea.sflag [#allocation3], 1
    %365 = vsyncpa %s364, 1

</llo_original>
